<compile_context>
chip_gen: v7x
topology: tpu7x:2x2x1
jax: 0.10.0
libtpu: 0.0.40
codegen_flags: <defaults>
</compile_context>

<pallas_src>
import functools

import jax
import jax.numpy as jnp
from jax.experimental import pallas as pl
from jax.experimental.pallas import tpu as pltpu


def _round_up(x, m):
    return ((x + m - 1) // m) * m


def _mlp_kernel(num_layers, compute_dtype, *refs):
    """refs = (x_ref, w0, b0, w1, b1, ..., out_ref).

    ReLU after every layer except the last (doLastRelu=False).  Matmuls run in
    compute_dtype on the MXU with f32 accumulation; bias add / ReLU in f32.
    """
    x_ref = refs[0]
    out_ref = refs[-1]
    params = refs[1:-1]

    h = x_ref[...].astype(compute_dtype)
    for layer in range(num_layers):
        w = params[2 * layer][...]          # already compute_dtype
        b = params[2 * layer + 1][...]      # f32 (1, d_out), broadcasts over rows
        y = jnp.dot(h, w, preferred_element_type=jnp.float32) + b
        if layer < num_layers - 1:
            h = jnp.maximum(y, 0.0).astype(compute_dtype)
        else:
            h = y
    out_ref[...] = h.astype(out_ref.dtype)


def mlp_decoder_forward(cw, weights, biases, num_points, *,
                        batch_tile=1024, compute_dtype=jnp.float32):
    """MlpDecoder forward with a single Pallas kernel.

    cw:      (B, dims[0]) array (f32, or bf16 if the producer already has it)
    weights: list of (d_in, d_out) float32 arrays (y = x @ W + b layout)
    biases:  list of (1, d_out) or (d_out,) float32 arrays
    returns: (B, num_points, 3) float32
    """
    B, d_in = cw.shape
    num_layers = len(weights)
    d_out = weights[-1].shape[1]
    assert d_out == 3 * num_points

    dims = [d_in] + [w.shape[1] for w in weights]
    assert dims[0] == d_in

    # Params at natural shapes; weights in compute dtype, biases in f32.
    params = []
    for w, b in zip(weights, biases):
        params.append(w.astype(compute_dtype))
        params.append(jnp.reshape(b, (1, -1)).astype(jnp.float32))

    # ---- Batch tiling (no padding unless B > tile and B % tile != 0) ----
    if B <= batch_tile:
        tb = B                      # single full-batch block: always legal
        Bp = B
    else:
        tb = _round_up(batch_tile, 16)   # sublane-safe for f32 and bf16 tiles
        Bp = _round_up(B, tb)
    x = cw if Bp == B else jnp.pad(cw, ((0, Bp - B), (0, 0)))
    grid = (Bp // tb,)

    # x/out tiled over batch; weights/biases are whole-array blocks reused each
    # grid step (constant index_map -> DMA'd once).
    in_specs = [pl.BlockSpec((tb, d_in), lambda i: (i, 0))]
    for li in range(num_layers):
        in_specs.append(
            pl.BlockSpec((dims[li], dims[li + 1]), lambda i: (0, 0)))
        in_specs.append(pl.BlockSpec((1, dims[li + 1]), lambda i: (0, 0)))
    out_specs = pl.BlockSpec((tb, d_out), lambda i: (i, 0))

    # Explicit VMEM budget: double-buffered x/out tiles + (double-buffered)
    # params + a few activation slabs of headroom.  Capped at 48 MiB (v7x-safe).
    x_item = jnp.dtype(x.dtype).itemsize
    io_bytes = 2 * tb * (d_in * x_item + d_out * 4)
    param_bytes = 2 * sum(int(p.size) * p.dtype.itemsize for p in params)
    act_bytes = 4 * tb * max(dims) * 4
    vmem_limit = int(min(max(2 * (io_bytes + param_bytes + act_bytes),
                             4 << 20), 48 << 20))

    kernel = functools.partial(_mlp_kernel, num_layers, compute_dtype)

    flat = pl.pallas_call(
        kernel,
        out_shape=jax.ShapeDtypeStruct((Bp, d_out), jnp.float32),
        grid=grid,
        in_specs=in_specs,
        out_specs=out_specs,
        compiler_params=pltpu.CompilerParams(
            dimension_semantics=("parallel",),
            vmem_limit_bytes=vmem_limit,
        ),
    )(x, *params)

    if Bp != B:
        flat = flat[:B]
    # Matches PyTorch's out1.view(cw.shape[0], num_points, -1).
    return flat.reshape(B, num_points, -1)


def init_params(key, dims):
    """Deterministic init of (in, out) weights and (1, out) biases for each
    Linear layer (dims already includes the final 3*num_points)."""
    weights, biases = [], []
    for i in range(len(dims) - 1):
        key, kw, kb = jax.random.split(key, 3)
        fan_in = dims[i]
        bound = 1.0 / jnp.sqrt(fan_in)
        w = jax.random.uniform(
            kw, (dims[i], dims[i + 1]), jnp.float32, -bound, bound)
        b = jax.random.uniform(
            kb, (1, dims[i + 1]), jnp.float32, -bound, bound)
        weights.append(w)
        biases.append(b)
    return weights, biases


def reference_forward(cw, weights, biases, num_points):
    """Plain-JAX reference of the PyTorch module."""
    h = cw
    n = len(weights)
    for i, (w, b) in enumerate(zip(weights, biases)):
        h = h @ jnp.reshape(w, w.shape) + jnp.reshape(b, (1, -1))
        if i < n - 1:
            h = jnp.maximum(h, 0.0)
    return h.reshape(cw.shape[0], num_points, -1)


if __name__ == "__main__":
    # net_config equivalent
    num_points = 16
    dims = [32, 64, 64]                    # hidden MLP dims
    full_dims = dims + [3 * num_points]    # PointwiseMLP(dims + [3*num_points])

    key = jax.random.PRNGKey(0)
    key, kx, kx2 = jax.random.split(key, 3)
    weights, biases = init_params(key, full_dims)

    # --- Case 1: small batch -> single full-batch block, zero padding. ---
    B = 64
    cw = jax.random.normal(kx, (B, dims[0]), jnp.float32)
    ref = reference_forward(cw, weights, biases, num_points)

    out_f32 = mlp_decoder_forward(cw, weights, biases, num_points,
                                  compute_dtype=jnp.float32)
    out_f32 = jax.block_until_ready(out_f32)
    assert out_f32.shape == (B, num_points, 3), out_f32.shape
    assert jnp.allclose(out_f32, ref, atol=1e-5, rtol=1e-5), "f32 mismatch"

    out_bf16 = mlp_decoder_forward(cw, weights, biases, num_points,
                                   compute_dtype=jnp.bfloat16)
    out_bf16 = jax.block_until_ready(out_bf16)
    assert out_bf16.shape == (B, num_points, 3), out_bf16.shape
    assert jnp.allclose(out_bf16, ref, atol=1e-1, rtol=1e-1), "bf16 mismatch"

    # --- Case 2: batch larger than the tile -> multi-step grid + remainder. ---
    B2 = 200
    cw2 = jax.random.normal(kx2, (B2, dims[0]), jnp.float32)
    ref2 = reference_forward(cw2, weights, biases, num_points)
    out2 = mlp_decoder_forward(cw2, weights, biases, num_points,
                               batch_tile=64, compute_dtype=jnp.float32)
    out2 = jax.block_until_ready(out2)
    assert out2.shape == (B2, num_points, 3), out2.shape
    assert jnp.allclose(out2, ref2, atol=1e-5, rtol=1e-5), "grid mismatch"

    print("KERNEL_OK")
</pallas_src>

<mosaic_0001>
module attributes {stable_mosaic.version = 11 : i64} {
  func.func @_mlp_kernel(%arg0: i32, %arg1: memref<64x32xf32, #tpu.memory_space<vmem>>, %arg2: memref<32x64xf32, #tpu.memory_space<vmem>>, %arg3: memref<1x64xf32, #tpu.memory_space<vmem>>, %arg4: memref<64x64xf32, #tpu.memory_space<vmem>>, %arg5: memref<1x64xf32, #tpu.memory_space<vmem>>, %arg6: memref<64x48xf32, #tpu.memory_space<vmem>>, %arg7: memref<1x48xf32, #tpu.memory_space<vmem>>, %arg8: memref<64x48xf32, #tpu.memory_space<vmem>>) attributes {dimension_semantics = [#tpu.dimension_semantics<parallel>], iteration_bounds = array<i64: 1>, scalar_prefetch = 0 : i64, scratch_operands = 0 : i64, tpu.core_type = #tpu.core_type<tc>, window_params = [{transform_indices = @transform_0, window_bounds = array<i64: 64, 32>}, {pipeline_mode = #tpu.pipeline_mode<synchronous>, transform_indices = @transform_1, window_bounds = array<i64: 32, 64>}, {pipeline_mode = #tpu.pipeline_mode<synchronous>, transform_indices = @transform_2, window_bounds = array<i64: 1, 64>}, {pipeline_mode = #tpu.pipeline_mode<synchronous>, transform_indices = @transform_3, window_bounds = array<i64: 64, 64>}, {pipeline_mode = #tpu.pipeline_mode<synchronous>, transform_indices = @transform_4, window_bounds = array<i64: 1, 64>}, {pipeline_mode = #tpu.pipeline_mode<synchronous>, transform_indices = @transform_5, window_bounds = array<i64: 64, 48>}, {pipeline_mode = #tpu.pipeline_mode<synchronous>, transform_indices = @transform_6, window_bounds = array<i64: 1, 48>}, {transform_indices = @transform_7, window_bounds = array<i64: 64, 48>}]} {
    %c0 = arith.constant 0 : index
    %c0_0 = arith.constant 0 : index
    %0 = vector.load %arg1[%c0, %c0_0] : memref<64x32xf32, #tpu.memory_space<vmem>>, vector<64x32xf32>
    %c0_1 = arith.constant 0 : index
    %c0_2 = arith.constant 0 : index
    %1 = vector.load %arg2[%c0_1, %c0_2] : memref<32x64xf32, #tpu.memory_space<vmem>>, vector<32x64xf32>
    %c0_3 = arith.constant 0 : index
    %c0_4 = arith.constant 0 : index
    %2 = vector.load %arg3[%c0_3, %c0_4] : memref<1x64xf32, #tpu.memory_space<vmem>>, vector<1x64xf32>
    %cst = arith.constant dense<0.000000e+00> : vector<64x64xf32>
    %3 = tpu.matmul %0, %1, %cst {dimension_numbers = #tpu.dot_dimension_numbers<[1], [0], [0], [1], [0, 0, 1, 1], [], []>} : vector<64x32xf32>, vector<32x64xf32>, vector<64x64xf32> -> vector<64x64xf32>
    %4 = vector.broadcast %2 : vector<1x64xf32> to vector<64x64xf32>
    %5 = arith.addf %3, %4 : vector<64x64xf32>
    %cst_5 = arith.constant 0.000000e+00 : f32
    %6 = vector.broadcast %cst_5 : f32 to vector<64x64xf32>
    %7 = arith.maximumf %5, %6 : vector<64x64xf32>
    %c0_6 = arith.constant 0 : index
    %c0_7 = arith.constant 0 : index
    %8 = vector.load %arg4[%c0_6, %c0_7] : memref<64x64xf32, #tpu.memory_space<vmem>>, vector<64x64xf32>
    %c0_8 = arith.constant 0 : index
    %c0_9 = arith.constant 0 : index
    %9 = vector.load %arg5[%c0_8, %c0_9] : memref<1x64xf32, #tpu.memory_space<vmem>>, vector<1x64xf32>
    %cst_10 = arith.constant dense<0.000000e+00> : vector<64x64xf32>
    %10 = tpu.matmul %7, %8, %cst_10 {dimension_numbers = #tpu.dot_dimension_numbers<[1], [0], [0], [1], [0, 0, 1, 1], [], []>} : vector<64x64xf32>, vector<64x64xf32>, vector<64x64xf32> -> vector<64x64xf32>
    %11 = vector.broadcast %9 : vector<1x64xf32> to vector<64x64xf32>
    %12 = arith.addf %10, %11 : vector<64x64xf32>
    %cst_11 = arith.constant 0.000000e+00 : f32
    %13 = vector.broadcast %cst_11 : f32 to vector<64x64xf32>
    %14 = arith.maximumf %12, %13 : vector<64x64xf32>
    %c0_12 = arith.constant 0 : index
    %c0_13 = arith.constant 0 : index
    %15 = vector.load %arg6[%c0_12, %c0_13] : memref<64x48xf32, #tpu.memory_space<vmem>>, vector<64x48xf32>
    %c0_14 = arith.constant 0 : index
    %c0_15 = arith.constant 0 : index
    %16 = vector.load %arg7[%c0_14, %c0_15] : memref<1x48xf32, #tpu.memory_space<vmem>>, vector<1x48xf32>
    %cst_16 = arith.constant dense<0.000000e+00> : vector<64x48xf32>
    %17 = tpu.matmul %14, %15, %cst_16 {dimension_numbers = #tpu.dot_dimension_numbers<[1], [0], [0], [1], [0, 0, 1, 1], [], []>} : vector<64x64xf32>, vector<64x48xf32>, vector<64x48xf32> -> vector<64x48xf32>
    %18 = vector.broadcast %16 : vector<1x48xf32> to vector<64x48xf32>
    %19 = arith.addf %17, %18 : vector<64x48xf32>
    %c0_17 = arith.constant 0 : index
    %c0_18 = arith.constant 0 : index
    %20 = vector.load %arg8[%c0_17, %c0_18] : memref<64x48xf32, #tpu.memory_space<vmem>>, vector<64x48xf32>
    tpu.vector_store %arg8[%c0_17, %c0_18], %19 {strides = array<i32>} : memref<64x48xf32, #tpu.memory_space<vmem>>, vector<64x48xf32>,
    return
  }
  func.func @transform_0(%arg0: i32) -> (i32, i32) {
    %c0_i32 = arith.constant 0 : i32
    %c0_i32_0 = arith.constant 0 : i32
    return %arg0, %c0_i32 : i32, i32
  }
  func.func @transform_1(%arg0: i32) -> (i32, i32) {
    %c0_i32 = arith.constant 0 : i32
    %c0_i32_0 = arith.constant 0 : i32
    %c0_i32_1 = arith.constant 0 : i32
    return %c0_i32, %c0_i32_0 : i32, i32
  }
  func.func @transform_2(%arg0: i32) -> (i32, i32) {
    %c0_i32 = arith.constant 0 : i32
    %c0_i32_0 = arith.constant 0 : i32
    %c0_i32_1 = arith.constant 0 : i32
    return %c0_i32, %c0_i32_0 : i32, i32
  }
  func.func @transform_3(%arg0: i32) -> (i32, i32) {
    %c0_i32 = arith.constant 0 : i32
    %c0_i32_0 = arith.constant 0 : i32
    %c0_i32_1 = arith.constant 0 : i32
    return %c0_i32, %c0_i32_0 : i32, i32
  }
  func.func @transform_4(%arg0: i32) -> (i32, i32) {
    %c0_i32 = arith.constant 0 : i32
    %c0_i32_0 = arith.constant 0 : i32
    %c0_i32_1 = arith.constant 0 : i32
    return %c0_i32, %c0_i32_0 : i32, i32
  }
  func.func @transform_5(%arg0: i32) -> (i32, i32) {
    %c0_i32 = arith.constant 0 : i32
    %c0_i32_0 = arith.constant 0 : i32
    %c0_i32_1 = arith.constant 0 : i32
    return %c0_i32, %c0_i32_0 : i32, i32
  }
  func.func @transform_6(%arg0: i32) -> (i32, i32) {
    %c0_i32 = arith.constant 0 : i32
    %c0_i32_0 = arith.constant 0 : i32
    %c0_i32_1 = arith.constant 0 : i32
    return %c0_i32, %c0_i32_0 : i32, i32
  }
  func.func @transform_7(%arg0: i32) -> (i32, i32) {
    %c0_i32 = arith.constant 0 : i32
    %c0_i32_0 = arith.constant 0 : i32
    return %arg0, %c0_i32 : i32, i32
  }
}

</mosaic_0001>

<llo_original>
// kernel: tpu_custom_call.1
$region0: #{tpu_custom_call.1}
  #allocation0 [shape = 'u32[]', space=smem, size = 0x4, offset = 0x4, fixed_abs, tag = 'smem constant byte address 0x4 - core index']
  #allocation1 [shape = 'u32[144,128]{1,0:T(1,128)}', space=vmem, size = 0x12000, scoped, tag = 'internal scratch']
  %s0 = inlined_call_operand.vmem [shape: f32[64,32], index: 0, kind: input, shape index: {}]
  %s1 = inlined_call_operand.vmem [shape: f32[32,64], index: 1, kind: input, shape index: {}]
  %s2 = inlined_call_operand.vmem [shape: f32[1,64], index: 2, kind: input, shape index: {}]
  %s3 = inlined_call_operand.vmem [shape: f32[64,64], index: 3, kind: input, shape index: {}]
  %s4 = inlined_call_operand.vmem [shape: f32[1,64], index: 4, kind: input, shape index: {}]
  %s5 = inlined_call_operand.vmem [shape: f32[64,48], index: 5, kind: input, shape index: {}]
  %s6 = inlined_call_operand.vmem [shape: f32[1,48], index: 6, kind: input, shape index: {}]
  %s7 = inlined_call_operand.vmem [shape: f32[64,48], index: 7, kind: output, shape index: {}]
  %s8 = sld [smem:[#allocation0]]
  $region38: #{tpu_custom_call.1} parent=0
    _
  %s10 = ssub.s32 1, %s8
  %s11 = scalar_select 0, %s10, %s8
  // Predicated region
  $region2: #{tpu_custom_call.1} parent=0 // pred_check
    _
  $region3: #{tpu_custom_call.1} parent=0 // pred_check_branch
    %13 = sbr.rel (0) target = $region5
  $region4: #{tpu_custom_call.1} parent=0 // pred_region
    _
  $region5: #{tpu_custom_call.1} parent=0 // pred_fallthru
    _
  // Predicated region
  $region6: #{tpu_custom_call.1} parent=0 // pred_check
    _
  $region7: #{tpu_custom_call.1} parent=0 // pred_check_branch
    %15 = sbr.rel (0) target = $region9
  $region8: #{tpu_custom_call.1} parent=0 // pred_region
    _
  $region9: #{tpu_custom_call.1} parent=0 // pred_fallthru
    _
  // Predicated region
  $region10: #{tpu_custom_call.1} parent=0 // pred_check
    _
  $region11: #{tpu_custom_call.1} parent=0 // pred_check_branch
    %17 = sbr.rel (0) target = $region13
  $region12: #{tpu_custom_call.1} parent=0 // pred_region
    _
  $region13: #{tpu_custom_call.1} parent=0 // pred_fallthru
    _
  // Predicated region
  $region14: #{tpu_custom_call.1} parent=0 // pred_check
    _
  $region15: #{tpu_custom_call.1} parent=0 // pred_check_branch
    %19 = sbr.rel (0) target = $region17
  $region16: #{tpu_custom_call.1} parent=0 // pred_region
    _
  $region17: #{tpu_custom_call.1} parent=0 // pred_fallthru
    _
  // Predicated region
  $region18: #{tpu_custom_call.1} parent=0 // pred_check
    _
  $region19: #{tpu_custom_call.1} parent=0 // pred_check_branch
    %21 = sbr.rel (0) target = $region21
  $region20: #{tpu_custom_call.1} parent=0 // pred_region
    _
  $region21: #{tpu_custom_call.1} parent=0 // pred_fallthru
    _
  // Predicated region
  $region22: #{tpu_custom_call.1} parent=0 // pred_check
    _
  $region23: #{tpu_custom_call.1} parent=0 // pred_check_branch
    %23 = sbr.rel (0) target = $region25
  $region24: #{tpu_custom_call.1} parent=0 // pred_region
    _
  $region25: #{tpu_custom_call.1} parent=0 // pred_fallthru
    _
  // Predicated region
  $region26: #{tpu_custom_call.1} parent=0 // pred_check
    _
  $region27: #{tpu_custom_call.1} parent=0 // pred_check_branch
    %25 = sbr.rel (0) target = $region29
  $region28: #{tpu_custom_call.1} parent=0 // pred_region
    _
  $region29: #{tpu_custom_call.1} parent=0 // pred_fallthru
    _
  %v26 = vld [vmem:[%s0] sm:$0xff]
  %v27 = vld [vmem:[%s0 + $0x8] sm:$0xff]
  %v28 = vld [vmem:[%s0 + $0x10] sm:$0xff]
  %v29 = vld [vmem:[%s0 + $0x18] sm:$0xff]
  %v30 = vld [vmem:[%s0 + $0x20] sm:$0xff]
  %v31 = vld [vmem:[%s0 + $0x28] sm:$0xff]
  %v32 = vld [vmem:[%s0 + $0x30] sm:$0xff]
  %v33 = vld [vmem:[%s0 + $0x38] sm:$0xff]
  %v34 = vld [vmem:[%s1] sm:$0xff]
  %v35 = vld [vmem:[%s1 + $0x8] sm:$0xff]
  %v36 = vld [vmem:[%s1 + $0x10] sm:$0xff]
  %v37 = vld [vmem:[%s1 + $0x18] sm:$0xff]
  %v38 = vld [vmem:[%s2] sm:$0x1]
  %v40 = vlaneseq
  %v41 = vshrl.u32 %v40, 7
  %v42 = vsub.s32 0, %v41
  %v43 = vrot.slane %v38, %v42
  %vm45 = vcmask 261120
  %v47 = vsel %vm45, %v26, 0
  %v50 = vsel %vm45, %v27, 0
  %v53 = vsel %vm45, %v28, 0
  %v56 = vsel %vm45, %v29, 0
  %v59 = vsel %vm45, %v30, 0
  %v62 = vsel %vm45, %v31, 0
  %v65 = vsel %vm45, %v32, 0
  %v68 = vsel %vm45, %v33, 0
  %70 = vmatprep.subr.mxu0 0.0
  %71 = vmatpush1.msra.mxu0 %v34
  %72 = vmatprep.subr.mxu0 0.0
  %73 = vmatpush1.msra.mxu0 %v35
  %74 = vmatprep.subr.mxu0 0.0
  %75 = vmatpush1.msra.mxu0 %v36
  %76 = vmatprep.subr.mxu0 0.0
  %77 = vmatpush1.msra.mxu0 %v37
  %78 = vmatprep.subr.mxu0 0.0
  %79 = vmatpush1.msra.mxu0 0.0
  %80 = vmatprep.subr.mxu0 0.0
  %81 = vmatpush1.msra.mxu0 0.0
  %82 = vmatprep.subr.mxu0 0.0
  %83 = vmatpush1.msra.mxu0 0.0
  %84 = vmatprep.subr.mxu0 0.0
  %85 = vmatpush1.msra.mxu0 0.0
  %86 = vmatprep.subr.mxu0 0.0
  %87 = vmatpush1.msra.mxu0 0.0
  %88 = vmatprep.subr.mxu0 0.0
  %89 = vmatpush1.msra.mxu0 0.0
  %90 = vmatprep.subr.mxu0 0.0
  %91 = vmatpush1.msra.mxu0 0.0
  %92 = vmatprep.subr.mxu0 0.0
  %93 = vmatpush1.msra.mxu0 0.0
  %94 = vmatprep.subr.mxu0 0.0
  %95 = vmatpush1.msra.mxu0 0.0
  %96 = vmatprep.subr.mxu0 0.0
  %97 = vmatpush1.msra.mxu0 0.0
  %98 = vmatprep.subr.mxu0 0.0
  %99 = vmatpush1.msra.mxu0 0.0
  %100 = vmatprep.subr.mxu0 0.0
  %101 = vmatpush1.msra.mxu0 0.0
  %102 = vmatprep.subr.mxu0 0.0
  %103 = vmatpush1.msra.mxu0 0.0
  %104 = vmatprep.subr.mxu0 0.0
  %105 = vmatpush1.msra.mxu0 0.0
  %106 = vmatprep.subr.mxu0 0.0
  %107 = vmatpush1.msra.mxu0 0.0
  %108 = vmatprep.subr.mxu0 0.0
  %109 = vmatpush1.msra.mxu0 0.0
  %110 = vmatprep.subr.mxu0 0.0
  %111 = vmatpush1.msra.mxu0 0.0
  %112 = vmatprep.subr.mxu0 0.0
  %113 = vmatpush1.msra.mxu0 0.0
  %114 = vmatprep.subr.mxu0 0.0
  %115 = vmatpush1.msra.mxu0 0.0
  %116 = vmatprep.subr.mxu0 0.0
  %117 = vmatpush1.msra.mxu0 0.0
  %118 = vmatprep.subr.mxu0 0.0
  %119 = vmatpush1.msra.mxu0 0.0
  %120 = vmatprep.subr.mxu0 0.0
  %121 = vmatpush1.msra.mxu0 0.0
  %122 = vmatprep.subr.mxu0 0.0
  %123 = vmatpush1.msra.mxu0 0.0
  %124 = vmatprep.subr.mxu0 0.0
  %125 = vmatpush1.msra.mxu0 0.0
  %126 = vmatprep.subr.mxu0 0.0
  %127 = vmatpush1.msra.mxu0 0.0
  %128 = vmatprep.subr.mxu0 0.0
  %129 = vmatpush1.msra.mxu0 0.0
  %130 = vmatprep.subr.mxu0 0.0
  %131 = vmatpush1.msra.mxu0 0.0
  %132 = vmatprep.subr.mxu0 0.0
  %133 = vmatpush1.msra.mxu0 0.0
  %134 = vmatprep.mubr.f32.mxu0 0.0
  %135 = vmatmul.mubr.f32.gmra.mrb[0].mxu0 %v47
  %v136 = vpop.f32.mrb[0].mxu0
  %v137 = vadd.f32 %v43, %v136
  %v138 = vpop.f32.mrb[0].mxu0
  %139 = vmatprep.mubr.f32.mxu0 0.0
  %140 = vmatmul.mubr.f32.gmra.mrb[0].mxu0 %v50
  %v141 = vpop.f32.mrb[0].mxu0
  %v142 = vadd.f32 %v43, %v141
  %v143 = vpop.f32.mrb[0].mxu0
  %144 = vmatprep.mubr.f32.mxu0 0.0
  %145 = vmatmul.mubr.f32.gmra.mrb[0].mxu0 %v53
  %v146 = vpop.f32.mrb[0].mxu0
  %v147 = vadd.f32 %v43, %v146
  %v148 = vpop.f32.mrb[0].mxu0
  %149 = vmatprep.mubr.f32.mxu0 0.0
  %150 = vmatmul.mubr.f32.gmra.mrb[0].mxu0 %v56
  %v151 = vpop.f32.mrb[0].mxu0
  %v152 = vadd.f32 %v43, %v151
  %v153 = vpop.f32.mrb[0].mxu0
  %154 = vmatprep.mubr.f32.mxu0 0.0
  %155 = vmatmul.mubr.f32.gmra.mrb[0].mxu0 %v59
  %v156 = vpop.f32.mrb[0].mxu0
  %v157 = vadd.f32 %v43, %v156
  %v158 = vpop.f32.mrb[0].mxu0
  %159 = vmatprep.mubr.f32.mxu0 0.0
  %160 = vmatmul.mubr.f32.gmra.mrb[0].mxu0 %v62
  %v161 = vpop.f32.mrb[0].mxu0
  %v162 = vadd.f32 %v43, %v161
  %v163 = vpop.f32.mrb[0].mxu0
  %164 = vmatprep.mubr.f32.mxu0 0.0
  %165 = vmatmul.mubr.f32.gmra.mrb[0].mxu0 %v65
  %v166 = vpop.f32.mrb[0].mxu0
  %v167 = vadd.f32 %v43, %v166
  %v168 = vpop.f32.mrb[0].mxu0
  %169 = vmatprep.mubr.f32.mxu0 0.0
  %170 = vmatmul.mubr.f32.gmra.mrb[0].mxu0 %v68
  %v171 = vpop.f32.mrb[0].mxu0
  %v172 = vadd.f32 %v43, %v171
  %v173 = vpop.f32.mrb[0].mxu0
  %174 = vdwg.mxu0
  %v175 = vmax.f32 %v137, 0.0
  %v176 = vmax.f32 %v142, 0.0
  %v177 = vmax.f32 %v147, 0.0
  %v178 = vmax.f32 %v152, 0.0
  %v179 = vmax.f32 %v157, 0.0
  %v180 = vmax.f32 %v162, 0.0
  %v181 = vmax.f32 %v167, 0.0
  %v182 = vmax.f32 %v172, 0.0
  %v183 = vld [vmem:[%s3] sm:$0xff]
  %v184 = vld [vmem:[%s3 + $0x8] sm:$0xff]
  %v185 = vld [vmem:[%s3 + $0x10] sm:$0xff]
  %v186 = vld [vmem:[%s3 + $0x18] sm:$0xff]
  %v187 = vld [vmem:[%s3 + $0x20] sm:$0xff]
  %v188 = vld [vmem:[%s3 + $0x28] sm:$0xff]
  %v189 = vld [vmem:[%s3 + $0x30] sm:$0xff]
  %v190 = vld [vmem:[%s3 + $0x38] sm:$0xff]
  %v191 = vld [vmem:[%s4] sm:$0x1]
  %v193 = vlaneseq
  %v194 = vshrl.u32 %v193, 7
  %v195 = vsub.s32 0, %v194
  %v196 = vrot.slane %v191, %v195
  %vm198 = vcmask 523264
  %v200 = vsel %vm198, %v175, 0
  %v203 = vsel %vm198, %v176, 0
  %v206 = vsel %vm198, %v177, 0
  %v209 = vsel %vm198, %v178, 0
  %v212 = vsel %vm198, %v179, 0
  %v215 = vsel %vm198, %v180, 0
  %v218 = vsel %vm198, %v181, 0
  %v221 = vsel %vm198, %v182, 0
  %223 = vmatprep.subr.mxu0 0.0
  %224 = vmatpush1.msra.mxu0 %v183
  %225 = vmatprep.subr.mxu0 0.0
  %226 = vmatpush1.msra.mxu0 %v184
  %227 = vmatprep.subr.mxu0 0.0
  %228 = vmatpush1.msra.mxu0 %v185
  %229 = vmatprep.subr.mxu0 0.0
  %230 = vmatpush1.msra.mxu0 %v186
  %231 = vmatprep.subr.mxu0 0.0
  %232 = vmatpush1.msra.mxu0 %v187
  %233 = vmatprep.subr.mxu0 0.0
  %234 = vmatpush1.msra.mxu0 %v188
  %235 = vmatprep.subr.mxu0 0.0
  %236 = vmatpush1.msra.mxu0 %v189
  %237 = vmatprep.subr.mxu0 0.0
  %238 = vmatpush1.msra.mxu0 %v190
  %239 = vmatprep.subr.mxu0 0.0
  %240 = vmatpush1.msra.mxu0 0.0
  %241 = vmatprep.subr.mxu0 0.0
  %242 = vmatpush1.msra.mxu0 0.0
  %243 = vmatprep.subr.mxu0 0.0
  %244 = vmatpush1.msra.mxu0 0.0
  %245 = vmatprep.subr.mxu0 0.0
  %246 = vmatpush1.msra.mxu0 0.0
  %247 = vmatprep.subr.mxu0 0.0
  %248 = vmatpush1.msra.mxu0 0.0
  %249 = vmatprep.subr.mxu0 0.0
  %250 = vmatpush1.msra.mxu0 0.0
  %251 = vmatprep.subr.mxu0 0.0
  %252 = vmatpush1.msra.mxu0 0.0
  %253 = vmatprep.subr.mxu0 0.0
  %254 = vmatpush1.msra.mxu0 0.0
  %255 = vmatprep.subr.mxu0 0.0
  %256 = vmatpush1.msra.mxu0 0.0
  %257 = vmatprep.subr.mxu0 0.0
  %258 = vmatpush1.msra.mxu0 0.0
  %259 = vmatprep.subr.mxu0 0.0
  %260 = vmatpush1.msra.mxu0 0.0
  %261 = vmatprep.subr.mxu0 0.0
  %262 = vmatpush1.msra.mxu0 0.0
  %263 = vmatprep.subr.mxu0 0.0
  %264 = vmatpush1.msra.mxu0 0.0
  %265 = vmatprep.subr.mxu0 0.0
  %266 = vmatpush1.msra.mxu0 0.0
  %267 = vmatprep.subr.mxu0 0.0
  %268 = vmatpush1.msra.mxu0 0.0
  %269 = vmatprep.subr.mxu0 0.0
  %270 = vmatpush1.msra.mxu0 0.0
  %271 = vmatprep.subr.mxu0 0.0
  %272 = vmatpush1.msra.mxu0 0.0
  %273 = vmatprep.subr.mxu0 0.0
  %274 = vmatpush1.msra.mxu0 0.0
  %275 = vmatprep.subr.mxu0 0.0
  %276 = vmatpush1.msra.mxu0 0.0
  %277 = vmatprep.subr.mxu0 0.0
  %278 = vmatpush1.msra.mxu0 0.0
  %279 = vmatprep.subr.mxu0 0.0
  %280 = vmatpush1.msra.mxu0 0.0
  %281 = vmatprep.subr.mxu0 0.0
  %282 = vmatpush1.msra.mxu0 0.0
  %283 = vmatprep.subr.mxu0 0.0
  %284 = vmatpush1.msra.mxu0 0.0
  %285 = vmatprep.subr.mxu0 0.0
  %286 = vmatpush1.msra.mxu0 0.0
  %287 = vmatprep.mubr.f32.mxu0 0.0
  %288 = vmatmul.mubr.f32.gmra.mrb[0].mxu0 %v200
  %v289 = vpop.f32.mrb[0].mxu0
  %v290 = vadd.f32 %v196, %v289
  %v291 = vpop.f32.mrb[0].mxu0
  %292 = vmatprep.mubr.f32.mxu0 0.0
  %293 = vmatmul.mubr.f32.gmra.mrb[0].mxu0 %v203
  %v294 = vpop.f32.mrb[0].mxu0
  %v295 = vadd.f32 %v196, %v294
  %v296 = vpop.f32.mrb[0].mxu0
  %297 = vmatprep.mubr.f32.mxu0 0.0
  %298 = vmatmul.mubr.f32.gmra.mrb[0].mxu0 %v206
  %v299 = vpop.f32.mrb[0].mxu0
  %v300 = vadd.f32 %v196, %v299
  %v301 = vpop.f32.mrb[0].mxu0
  %302 = vmatprep.mubr.f32.mxu0 0.0
  %303 = vmatmul.mubr.f32.gmra.mrb[0].mxu0 %v209
  %v304 = vpop.f32.mrb[0].mxu0
  %v305 = vadd.f32 %v196, %v304
  %v306 = vpop.f32.mrb[0].mxu0
  %307 = vmatprep.mubr.f32.mxu0 0.0
  %308 = vmatmul.mubr.f32.gmra.mrb[0].mxu0 %v212
  %v309 = vpop.f32.mrb[0].mxu0
  %v310 = vadd.f32 %v196, %v309
  %v311 = vpop.f32.mrb[0].mxu0
  %312 = vmatprep.mubr.f32.mxu0 0.0
  %313 = vmatmul.mubr.f32.gmra.mrb[0].mxu0 %v215
  %v314 = vpop.f32.mrb[0].mxu0
  %v315 = vadd.f32 %v196, %v314
  %v316 = vpop.f32.mrb[0].mxu0
  %317 = vmatprep.mubr.f32.mxu0 0.0
  %318 = vmatmul.mubr.f32.gmra.mrb[0].mxu0 %v218
  %v319 = vpop.f32.mrb[0].mxu0
  %v320 = vadd.f32 %v196, %v319
  %v321 = vpop.f32.mrb[0].mxu0
  %322 = vmatprep.mubr.f32.mxu0 0.0
  %323 = vmatmul.mubr.f32.gmra.mrb[0].mxu0 %v221
  %v324 = vpop.f32.mrb[0].mxu0
  %v325 = vadd.f32 %v196, %v324
  %v326 = vpop.f32.mrb[0].mxu0
  %327 = vdwg.mxu0
  %v328 = vmax.f32 %v290, 0.0
  %v329 = vmax.f32 %v295, 0.0
  %v330 = vmax.f32 %v300, 0.0
  %v331 = vmax.f32 %v305, 0.0
  %v332 = vmax.f32 %v310, 0.0
  %v333 = vmax.f32 %v315, 0.0
  %v334 = vmax.f32 %v320, 0.0
  %v335 = vmax.f32 %v325, 0.0
  %v336 = vld [vmem:[%s5] sm:$0xff]
  %v337 = vld [vmem:[%s5 + $0x8] sm:$0xff]
  %v338 = vld [vmem:[%s5 + $0x10] sm:$0xff]
  %v339 = vld [vmem:[%s5 + $0x18] sm:$0xff]
  %v340 = vld [vmem:[%s5 + $0x20] sm:$0xff]
  %v341 = vld [vmem:[%s5 + $0x28] sm:$0xff]
  %v342 = vld [vmem:[%s5 + $0x30] sm:$0xff]
  %v343 = vld [vmem:[%s5 + $0x38] sm:$0xff]
  %v344 = vld [vmem:[%s6] sm:$0x1]
  %v346 = vlaneseq
  %v347 = vshrl.u32 %v346, 7
  %v348 = vsub.s32 0, %v347
  %v349 = vrot.slane %v344, %v348
  %v352 = vsel %vm198, %v328, 0
  %v355 = vsel %vm198, %v329, 0
  %v358 = vsel %vm198, %v330, 0
  %v361 = vsel %vm198, %v331, 0
  %v364 = vsel %vm198, %v332, 0
  %v367 = vsel %vm198, %v333, 0
  %v370 = vsel %vm198, %v334, 0
  %v373 = vsel %vm198, %v335, 0
  %375 = vmatprep.subr.mxu0 0.0
  %376 = vmatpush1.msra.mxu0 %v336
  %377 = vmatprep.subr.mxu0 0.0
  %378 = vmatpush1.msra.mxu0 %v337
  %379 = vmatprep.subr.mxu0 0.0
  %380 = vmatpush1.msra.mxu0 %v338
  %381 = vmatprep.subr.mxu0 0.0
  %382 = vmatpush1.msra.mxu0 %v339
  %383 = vmatprep.subr.mxu0 0.0
  %384 = vmatpush1.msra.mxu0 %v340
  %385 = vmatprep.subr.mxu0 0.0
  %386 = vmatpush1.msra.mxu0 %v341
  %387 = vmatprep.subr.mxu0 0.0
  %388 = vmatpush1.msra.mxu0 %v342
  %389 = vmatprep.subr.mxu0 0.0
  %390 = vmatpush1.msra.mxu0 %v343
  %391 = vmatprep.subr.mxu0 0.0
  %392 = vmatpush1.msra.mxu0 0.0
  %393 = vmatprep.subr.mxu0 0.0
  %394 = vmatpush1.msra.mxu0 0.0
  %395 = vmatprep.subr.mxu0 0.0
  %396 = vmatpush1.msra.mxu0 0.0
  %397 = vmatprep.subr.mxu0 0.0
  %398 = vmatpush1.msra.mxu0 0.0
  %399 = vmatprep.subr.mxu0 0.0
  %400 = vmatpush1.msra.mxu0 0.0
  %401 = vmatprep.subr.mxu0 0.0
  %402 = vmatpush1.msra.mxu0 0.0
  %403 = vmatprep.subr.mxu0 0.0
  %404 = vmatpush1.msra.mxu0 0.0
  %405 = vmatprep.subr.mxu0 0.0
  %406 = vmatpush1.msra.mxu0 0.0
  %407 = vmatprep.subr.mxu0 0.0
  %408 = vmatpush1.msra.mxu0 0.0
  %409 = vmatprep.subr.mxu0 0.0
  %410 = vmatpush1.msra.mxu0 0.0
  %411 = vmatprep.subr.mxu0 0.0
  %412 = vmatpush1.msra.mxu0 0.0
  %413 = vmatprep.subr.mxu0 0.0
  %414 = vmatpush1.msra.mxu0 0.0
  %415 = vmatprep.subr.mxu0 0.0
  %416 = vmatpush1.msra.mxu0 0.0
  %417 = vmatprep.subr.mxu0 0.0
  %418 = vmatpush1.msra.mxu0 0.0
  %419 = vmatprep.subr.mxu0 0.0
  %420 = vmatpush1.msra.mxu0 0.0
  %421 = vmatprep.subr.mxu0 0.0
  %422 = vmatpush1.msra.mxu0 0.0
  %423 = vmatprep.subr.mxu0 0.0
  %424 = vmatpush1.msra.mxu0 0.0
  %425 = vmatprep.subr.mxu0 0.0
  %426 = vmatpush1.msra.mxu0 0.0
  %427 = vmatprep.subr.mxu0 0.0
  %428 = vmatpush1.msra.mxu0 0.0
  %429 = vmatprep.subr.mxu0 0.0
  %430 = vmatpush1.msra.mxu0 0.0
  %431 = vmatprep.subr.mxu0 0.0
  %432 = vmatpush1.msra.mxu0 0.0
  %433 = vmatprep.subr.mxu0 0.0
  %434 = vmatpush1.msra.mxu0 0.0
  %435 = vmatprep.subr.mxu0 0.0
  %436 = vmatpush1.msra.mxu0 0.0
  %437 = vmatprep.subr.mxu0 0.0
  %438 = vmatpush1.msra.mxu0 0.0
  %439 = vmatprep.mubr.f32.mxu0 0.0
  %440 = vmatmul.mubr.f32.gmra.mrb[0].mxu0 %v352
  %v441 = vpop.f32.mrb[0].mxu0
  %v442 = vadd.f32 %v349, %v441
  %v443 = vpop.f32.mrb[0].mxu0
  %444 = vmatprep.mubr.f32.mxu0 0.0
  %445 = vmatmul.mubr.f32.gmra.mrb[0].mxu0 %v355
  %v446 = vpop.f32.mrb[0].mxu0
  %v447 = vadd.f32 %v349, %v446
  %v448 = vpop.f32.mrb[0].mxu0
  %449 = vmatprep.mubr.f32.mxu0 0.0
  %450 = vmatmul.mubr.f32.gmra.mrb[0].mxu0 %v358
  %v451 = vpop.f32.mrb[0].mxu0
  %v452 = vadd.f32 %v349, %v451
  %v453 = vpop.f32.mrb[0].mxu0
  %454 = vmatprep.mubr.f32.mxu0 0.0
  %455 = vmatmul.mubr.f32.gmra.mrb[0].mxu0 %v361
  %v456 = vpop.f32.mrb[0].mxu0
  %v457 = vadd.f32 %v349, %v456
  %v458 = vpop.f32.mrb[0].mxu0
  %459 = vmatprep.mubr.f32.mxu0 0.0
  %460 = vmatmul.mubr.f32.gmra.mrb[0].mxu0 %v364
  %v461 = vpop.f32.mrb[0].mxu0
  %v462 = vadd.f32 %v349, %v461
  %v463 = vpop.f32.mrb[0].mxu0
  %464 = vmatprep.mubr.f32.mxu0 0.0
  %465 = vmatmul.mubr.f32.gmra.mrb[0].mxu0 %v367
  %v466 = vpop.f32.mrb[0].mxu0
  %v467 = vadd.f32 %v349, %v466
  %v468 = vpop.f32.mrb[0].mxu0
  %469 = vmatprep.mubr.f32.mxu0 0.0
  %470 = vmatmul.mubr.f32.gmra.mrb[0].mxu0 %v370
  %v471 = vpop.f32.mrb[0].mxu0
  %v472 = vadd.f32 %v349, %v471
  %v473 = vpop.f32.mrb[0].mxu0
  %474 = vmatprep.mubr.f32.mxu0 0.0
  %475 = vmatmul.mubr.f32.gmra.mrb[0].mxu0 %v373
  %v476 = vpop.f32.mrb[0].mxu0
  %v477 = vadd.f32 %v349, %v476
  %v478 = vpop.f32.mrb[0].mxu0
  %479 = vdwg.mxu0
  %vm480 = vcmask 392192
  %481 = vst.msk [vmem:[%s7] sm:$0xff] %vm480, %v442
  %482 = vst.msk [vmem:[%s7 + $0x8] sm:$0xff] %vm480, %v447
  %483 = vst.msk [vmem:[%s7 + $0x10] sm:$0xff] %vm480, %v452
  %484 = vst.msk [vmem:[%s7 + $0x18] sm:$0xff] %vm480, %v457
  %485 = vst.msk [vmem:[%s7 + $0x20] sm:$0xff] %vm480, %v462
  %486 = vst.msk [vmem:[%s7 + $0x28] sm:$0xff] %vm480, %v467
  %487 = vst.msk [vmem:[%s7 + $0x30] sm:$0xff] %vm480, %v472
  %488 = vst.msk [vmem:[%s7 + $0x38] sm:$0xff] %vm480, %v477
  // Predicated region
  $region30: #{tpu_custom_call.1} parent=0 // pred_check
    _
  $region31: #{tpu_custom_call.1} parent=0 // pred_check_branch
    %490 = sbr.rel (0) target = $region33
  $region32: #{tpu_custom_call.1} parent=0 // pred_region
    _
  $region33: #{tpu_custom_call.1} parent=0 // pred_fallthru
    _
  // Predicated region
  $region34: #{tpu_custom_call.1} parent=0 // pred_check
    _
  $region35: #{tpu_custom_call.1} parent=0 // pred_check_branch
    %492 = sbr.rel (0) target = $region37
  $region36: #{tpu_custom_call.1} parent=0 // pred_region
    _
  $region37: #{tpu_custom_call.1} parent=0 // pred_fallthru
    _

</llo_original>
